<compile_context>
chip_gen: v6e
topology: v6e:2x2x1
jax: 0.10.0
libtpu: 0.0.40
codegen_flags: <defaults>
</compile_context>

<pallas_src>
import functools

import jax
import jax.numpy as jnp
from jax.experimental import pallas as pl
from jax.experimental.pallas import tpu as pltpu  # noqa: F401  (TPU backend)


def _layernorm(x, w, b, eps):
    mu = jnp.mean(x, axis=-1, keepdims=True)
    var = jnp.mean((x - mu) ** 2, axis=-1, keepdims=True)
    return (x - mu) * jax.lax.rsqrt(var + eps) * w + b


def encoder_layer_kernel(
    x_ref,                       # (N*L, E)        f32
    mask_ref,                    # (N*L, N*H*L)    f32  additive mask (+ -1e9 cross-batch)
    bmask_ref,                   # (N*H*L, E)      f32  head feature mask (0/1)
    rep_ref,                     # (N*H*L, N*L)    bf16 batch/head replication matrix
    dblk_ref,                    # (N*H*L, N*H*L)  bf16 per (batch, head) block row-sum
    ablk_ref,                    # (N*H*L, L)      bf16 head-average matrix (1/H blocks)
    wqkv_ref, bqkv_ref,          # (E, 3E) bf16, (1, 3E) f32   (Q scale folded in)
    wo_ref, bo_ref,              # (E, E) bf16, (1, E) f32
    ln1w_ref, ln1b_ref,          # (1, E) f32
    w1_ref, b1_ref,              # (E, 4*fc) bf16, (1, 4*fc) f32
    w2_ref, b2_ref,              # (4*fc, E) bf16, (1, E) f32
    ln2w_ref, ln2b_ref,          # (1, E) f32
    y_ref,                       # (N*L, E) f32
    attn_ref,                    # (N*L, L) f32  head-averaged attention weights (slab)
    *, embed_dim, eps,
):
    E = embed_dim

    x = x_ref[...]                                   # (N*L, E) f32
    xb = x.astype(jnp.bfloat16)

    # --- fused QKV projection: one MXU push, one bias add ---
    qkv = jnp.dot(xb, wqkv_ref[...],
                  preferred_element_type=jnp.float32) + bqkv_ref[...]   # (N*L, 3E)
    q = qkv[:, :E]
    k = qkv[:, E:2 * E]
    v = qkv[:, 2 * E:]

    # --- replicate K/V per (batch, head) with one tiny MXU matmul each ---
    # rep is 0/1, so the product is an exact copy; bmask zeroes out the feature
    # columns that do not belong to the row's head.
    bmask = bmask_ref[...]
    rep = rep_ref[...]
    k_full = (jnp.dot(rep, k.astype(jnp.bfloat16),
                      preferred_element_type=jnp.float32) * bmask).astype(jnp.bfloat16)
    v_full = (jnp.dot(rep, v.astype(jnp.bfloat16),
                      preferred_element_type=jnp.float32) * bmask).astype(jnp.bfloat16)

    # --- scores for ALL batches and heads in one dot: (N*L, N*H*L) ---
    # Contraction over the last dims -> no materialized transpose of K.
    s = jax.lax.dot_general(
        q.astype(jnp.bfloat16), k_full,
        dimension_numbers=(((1,), (1,)), ((), ())),
        preferred_element_type=jnp.float32) + mask_ref[...]

    # Row-global max is a constant-per-row shift, valid for every head block.
    m = jnp.max(s, axis=-1, keepdims=True)
    p = jnp.exp(s - m)                               # cross-batch cols underflow to 0
    pb = p.astype(jnp.bfloat16)

    # Per (batch, head) block denominators broadcast back via a bf16 block matmul.
    denom = jnp.dot(pb, dblk_ref[...], preferred_element_type=jnp.float32)
    denom = jnp.maximum(denom, 1e-30)                # guard exact-zero (masked) blocks
    pn = p * pl.reciprocal(denom, approx=True)
    pnb = pn.astype(jnp.bfloat16)

    # Head-averaged attention weights as a single lane-contiguous slab write.
    attn_ref[...] = jnp.dot(pnb, ablk_ref[...], preferred_element_type=jnp.float32)

    # P @ blocked V directly yields the concatenated (N*L, E) head output.
    o = jnp.dot(pnb, v_full, preferred_element_type=jnp.float32)

    # --- output projection + residual + layernorm1 ---
    attn_out = jnp.dot(o.astype(jnp.bfloat16), wo_ref[...],
                       preferred_element_type=jnp.float32) + bo_ref[...]
    r1 = _layernorm(x + attn_out, ln1w_ref[...], ln1b_ref[...], eps)

    # --- FFN: Linear -> ReLU -> Linear (dropout == identity in eval mode) ---
    h1 = jnp.dot(r1.astype(jnp.bfloat16), w1_ref[...],
                 preferred_element_type=jnp.float32) + b1_ref[...]
    h1 = jnp.maximum(h1, 0.0)
    fc = jnp.dot(h1.astype(jnp.bfloat16), w2_ref[...],
                 preferred_element_type=jnp.float32) + b2_ref[...]

    # --- residual + layernorm2 ---
    y_ref[...] = _layernorm(r1 + fc, ln2w_ref[...], ln2b_ref[...], eps)


def prepare_params(params, *, num_heads):
    """One-time host-side prep: split/transpose/fuse weights, fold the
    1/sqrt(head_dim) scale into the Q projection, cast MXU operands to bf16."""
    E = params["wout"].shape[0]
    hd = E // num_heads
    scale = 1.0 / (hd ** 0.5)

    wqkv = params["wqkv"]                            # (3E, E) PyTorch in_proj layout
    bqkv = params["bqkv"]                            # (3E,)
    wq, wk, wv = wqkv[:E], wqkv[E:2 * E], wqkv[2 * E:]
    bq, bk, bv = bqkv[:E], bqkv[E:2 * E], bqkv[2 * E:]

    wqkv_t = jnp.concatenate([(wq * scale).T, wk.T, wv.T], axis=1)   # (E, 3E)
    bqkv_f = jnp.concatenate([bq * scale, bk, bv]).reshape(1, -1)     # (1, 3E)

    return {
        "wqkv_t": wqkv_t.astype(jnp.bfloat16),
        "bqkv": bqkv_f.astype(jnp.float32),
        "wo_t": params["wout"].T.astype(jnp.bfloat16),
        "bo": params["bout"].reshape(1, -1),
        "ln1_w": params["ln1_w"].reshape(1, -1),
        "ln1_b": params["ln1_b"].reshape(1, -1),
        "w1_t": params["w1"].T.astype(jnp.bfloat16),
        "b1": params["b1"].reshape(1, -1),
        "w2_t": params["w2"].T.astype(jnp.bfloat16),
        "b2": params["b2"].reshape(1, -1),
        "ln2_w": params["ln2_w"].reshape(1, -1),
        "ln2_b": params["ln2_b"].reshape(1, -1),
    }


def _attention_constants(L, N, E, H, mask):
    """Tiny shape-only helper matrices for the batch-blocked attention."""
    hd = E // H
    NHL = N * H * L
    r = jnp.arange(NHL)
    rowb = r // (H * L)                    # batch index of each blocked K/V row
    rowh = (r // L) % H                    # head index
    rowj = r % L                           # source position

    # Replication matrix: row (n,h,j) copies k[n*L + j, :].
    rep = (jnp.arange(N * L)[None, :] == (rowb * L + rowj)[:, None]
           ).astype(jnp.bfloat16)                                   # (NHL, N*L)
    # Per-head feature mask on the E columns.
    bmask = (rowh[:, None] == (jnp.arange(E) // hd)[None, :]
             ).astype(jnp.float32)                                  # (NHL, E)
    # Same-(batch, head) block row-sum broadcaster.
    blk = rowb * H + rowh
    dblk = (blk[:, None] == blk[None, :]).astype(jnp.bfloat16)      # (NHL, NHL)
    # Head-average matrix (cross-batch cols of P are exact zeros, so no batch
    # restriction needed here).
    ablk = ((rowj[:, None] == jnp.arange(L)[None, :]).astype(jnp.float32)
            / H).astype(jnp.bfloat16)                               # (NHL, L)

    # Additive mask for the full blocked score slab; -1e9 kills cross-batch
    # columns exactly (exp underflows to 0 in f32).
    q = jnp.arange(N * L)
    qb, qi = q // L, q % L
    same_batch = qb[:, None] == rowb[None, :]
    mask_full = jnp.where(same_batch, mask[qi[:, None], rowj[None, :]],
                          -1e9).astype(jnp.float32)                 # (N*L, NHL)
    return mask_full, bmask, rep, dblk, ablk


def encoder_layer(x_lne, mask, prepped, *, num_heads, eps=1e-6):
    """x_lne: (L, N, E) f32 (seq-first, PyTorch batch_first=False);
    mask: (L, L) additive f32.
    Returns (out (L, N, E), attn_weights (N, L, L))."""
    L, N, E = x_lne.shape
    H = num_heads

    # Batch rides the matmul M dimension: one (N*L, E) slab, one pallas_call.
    x_flat = jnp.transpose(x_lne, (1, 0, 2)).reshape(N * L, E)

    mask_full, bmask, rep, dblk, ablk = _attention_constants(L, N, E, H, mask)

    kernel = functools.partial(encoder_layer_kernel, embed_dim=E, eps=eps)

    y, attn = pl.pallas_call(
        kernel,
        out_shape=(
            jax.ShapeDtypeStruct((N * L, E), jnp.float32),
            jax.ShapeDtypeStruct((N * L, L), jnp.float32),
        ),
    )(
        x_flat, mask_full, bmask, rep, dblk, ablk,
        prepped["wqkv_t"], prepped["bqkv"],
        prepped["wo_t"], prepped["bo"],
        prepped["ln1_w"], prepped["ln1_b"],
        prepped["w1_t"], prepped["b1"],
        prepped["w2_t"], prepped["b2"],
        prepped["ln2_w"], prepped["ln2_b"],
    )

    out = jnp.transpose(y.reshape(N, L, E), (1, 0, 2))
    return out, attn.reshape(N, L, L)


def init_params(key, embed_dim, fc_dim):
    H4 = fc_dim * 4
    ks = jax.random.split(key, 8)
    s = 0.05
    return {
        "wqkv": s * jax.random.normal(ks[0], (3 * embed_dim, embed_dim), jnp.float32),
        "bqkv": s * jax.random.normal(ks[1], (3 * embed_dim,), jnp.float32),
        "wout": s * jax.random.normal(ks[2], (embed_dim, embed_dim), jnp.float32),
        "bout": s * jax.random.normal(ks[3], (embed_dim,), jnp.float32),
        "ln1_w": jnp.ones((embed_dim,), jnp.float32),
        "ln1_b": jnp.zeros((embed_dim,), jnp.float32),
        "w1": s * jax.random.normal(ks[4], (H4, embed_dim), jnp.float32),
        "b1": s * jax.random.normal(ks[5], (H4,), jnp.float32),
        "w2": s * jax.random.normal(ks[6], (embed_dim, H4), jnp.float32),
        "b2": s * jax.random.normal(ks[7], (embed_dim,), jnp.float32),
        "ln2_w": jnp.ones((embed_dim,), jnp.float32),
        "ln2_b": jnp.zeros((embed_dim,), jnp.float32),
    }


if __name__ == "__main__":
    L, N, E = 8, 2, 32          # seq, batch, embedding_size
    num_heads = 4
    fc_dim = 32                 # FFN hidden = fc_dim * 4 = 128

    key = jax.random.PRNGKey(0)
    kx, km, kp = jax.random.split(key, 3)

    x = jax.random.normal(kx, (L, N, E), jnp.float32)
    mask = 0.1 * jax.random.normal(km, (L, L), jnp.float32)  # additive attn mask
    params = init_params(kp, E, fc_dim)
    prepped = prepare_params(params, num_heads=num_heads)    # one-time host prep

    out, attn = encoder_layer(x, mask, prepped, num_heads=num_heads, eps=1e-6)
    out = jax.block_until_ready(out)
    attn = jax.block_until_ready(attn)

    assert out.shape == (L, N, E) and attn.shape == (N, L, L)
    assert bool(jnp.all(jnp.isfinite(out))) and bool(jnp.all(jnp.isfinite(attn)))
    # head-averaged softmax rows must sum to ~1
    assert bool(jnp.allclose(jnp.sum(attn, axis=-1), 1.0, atol=1e-2))
    print("KERNEL_OK")
</pallas_src>

<mosaic_0001>
module attributes {stable_mosaic.version = 11 : i64} {
  func.func @encoder_layer_kernel(%arg0: memref<16x32xf32, #tpu.memory_space<vmem>>, %arg1: memref<16x64xf32, #tpu.memory_space<vmem>>, %arg2: memref<64x32xf32, #tpu.memory_space<vmem>>, %arg3: memref<64x16xbf16, #tpu.memory_space<vmem>>, %arg4: memref<64x64xbf16, #tpu.memory_space<vmem>>, %arg5: memref<64x8xbf16, #tpu.memory_space<vmem>>, %arg6: memref<32x96xbf16, #tpu.memory_space<vmem>>, %arg7: memref<1x96xf32, #tpu.memory_space<vmem>>, %arg8: memref<32x32xbf16, #tpu.memory_space<vmem>>, %arg9: memref<1x32xf32, #tpu.memory_space<vmem>>, %arg10: memref<1x32xf32, #tpu.memory_space<vmem>>, %arg11: memref<1x32xf32, #tpu.memory_space<vmem>>, %arg12: memref<32x128xbf16, #tpu.memory_space<vmem>>, %arg13: memref<1x128xf32, #tpu.memory_space<vmem>>, %arg14: memref<128x32xbf16, #tpu.memory_space<vmem>>, %arg15: memref<1x32xf32, #tpu.memory_space<vmem>>, %arg16: memref<1x32xf32, #tpu.memory_space<vmem>>, %arg17: memref<1x32xf32, #tpu.memory_space<vmem>>, %arg18: memref<16x32xf32, #tpu.memory_space<vmem>>, %arg19: memref<16x8xf32, #tpu.memory_space<vmem>>) attributes {dimension_semantics = [], scalar_prefetch = 0 : i64, scratch_operands = 0 : i64, tpu.core_type = #tpu.core_type<tc>} {
    %c0 = arith.constant 0 : index
    %c0_0 = arith.constant 0 : index
    %0 = vector.load %arg0[%c0, %c0_0] : memref<16x32xf32, #tpu.memory_space<vmem>>, vector<16x32xf32>
    %1 = arith.truncf %0 : vector<16x32xf32> to vector<16x32xbf16>
    %c0_1 = arith.constant 0 : index
    %c0_2 = arith.constant 0 : index
    %2 = vector.load %arg6[%c0_1, %c0_2] : memref<32x96xbf16, #tpu.memory_space<vmem>>, vector<32x96xbf16>
    %cst = arith.constant dense<0.000000e+00> : vector<16x96xf32>
    %3 = tpu.matmul %1, %2, %cst {dimension_numbers = #tpu.dot_dimension_numbers<[1], [0], [0], [1], [0, 0, 1, 1], [], []>} : vector<16x32xbf16>, vector<32x96xbf16>, vector<16x96xf32> -> vector<16x96xf32>
    %c0_3 = arith.constant 0 : index
    %c0_4 = arith.constant 0 : index
    %4 = vector.load %arg7[%c0_3, %c0_4] : memref<1x96xf32, #tpu.memory_space<vmem>>, vector<1x96xf32>
    %5 = vector.broadcast %4 : vector<1x96xf32> to vector<16x96xf32>
    %6 = arith.addf %3, %5 : vector<16x96xf32>
    %7 = vector.extract_strided_slice %6 {offsets = [0, 0], sizes = [16, 32], strides = [1, 1]} : vector<16x96xf32> to vector<16x32xf32>
    %8 = vector.extract_strided_slice %6 {offsets = [0, 32], sizes = [16, 32], strides = [1, 1]} : vector<16x96xf32> to vector<16x32xf32>
    %9 = vector.extract_strided_slice %6 {offsets = [0, 64], sizes = [16, 32], strides = [1, 1]} : vector<16x96xf32> to vector<16x32xf32>
    %c0_5 = arith.constant 0 : index
    %c0_6 = arith.constant 0 : index
    %10 = vector.load %arg2[%c0_5, %c0_6] : memref<64x32xf32, #tpu.memory_space<vmem>>, vector<64x32xf32>
    %c0_7 = arith.constant 0 : index
    %c0_8 = arith.constant 0 : index
    %11 = vector.load %arg3[%c0_7, %c0_8] : memref<64x16xbf16, #tpu.memory_space<vmem>>, vector<64x16xbf16>
    %12 = arith.truncf %8 : vector<16x32xf32> to vector<16x32xbf16>
    %cst_9 = arith.constant dense<0.000000e+00> : vector<64x32xf32>
    %13 = tpu.matmul %11, %12, %cst_9 {dimension_numbers = #tpu.dot_dimension_numbers<[1], [0], [0], [1], [0, 0, 1, 1], [], []>} : vector<64x16xbf16>, vector<16x32xbf16>, vector<64x32xf32> -> vector<64x32xf32>
    %14 = arith.mulf %13, %10 : vector<64x32xf32>
    %15 = arith.truncf %14 : vector<64x32xf32> to vector<64x32xbf16>
    %16 = arith.truncf %9 : vector<16x32xf32> to vector<16x32xbf16>
    %cst_10 = arith.constant dense<0.000000e+00> : vector<64x32xf32>
    %17 = tpu.matmul %11, %16, %cst_10 {dimension_numbers = #tpu.dot_dimension_numbers<[1], [0], [0], [1], [0, 0, 1, 1], [], []>} : vector<64x16xbf16>, vector<16x32xbf16>, vector<64x32xf32> -> vector<64x32xf32>
    %18 = arith.mulf %17, %10 : vector<64x32xf32>
    %19 = arith.truncf %18 : vector<64x32xf32> to vector<64x32xbf16>
    %20 = arith.truncf %7 : vector<16x32xf32> to vector<16x32xbf16>
    %cst_11 = arith.constant dense<0.000000e+00> : vector<16x64xf32>
    %21 = tpu.matmul %20, %15, %cst_11 {dimension_numbers = #tpu.dot_dimension_numbers<[1], [1], [0], [0], [0, 0, 1, 0], [], []>} : vector<16x32xbf16>, vector<64x32xbf16>, vector<16x64xf32> -> vector<16x64xf32>
    %c0_12 = arith.constant 0 : index
    %c0_13 = arith.constant 0 : index
    %22 = vector.load %arg1[%c0_12, %c0_13] : memref<16x64xf32, #tpu.memory_space<vmem>>, vector<16x64xf32>
    %23 = arith.addf %21, %22 : vector<16x64xf32>
    %cst_14 = arith.constant dense<0xFF800000> : vector<16xf32>
    %24 = vector.multi_reduction <maximumf>, %23, %cst_14 [1] : vector<16x64xf32> to vector<16xf32>
    %25 = vector.shape_cast %24 : vector<16xf32> to vector<16x1xf32>
    %26 = vector.broadcast %25 : vector<16x1xf32> to vector<16x64xf32>
    %27 = arith.subf %23, %26 : vector<16x64xf32>
    %28 = math.exp %27 : vector<16x64xf32>
    %29 = arith.truncf %28 : vector<16x64xf32> to vector<16x64xbf16>
    %c0_15 = arith.constant 0 : index
    %c0_16 = arith.constant 0 : index
    %30 = vector.load %arg4[%c0_15, %c0_16] : memref<64x64xbf16, #tpu.memory_space<vmem>>, vector<64x64xbf16>
    %cst_17 = arith.constant dense<0.000000e+00> : vector<16x64xf32>
    %31 = tpu.matmul %29, %30, %cst_17 {dimension_numbers = #tpu.dot_dimension_numbers<[1], [0], [0], [1], [0, 0, 1, 1], [], []>} : vector<16x64xbf16>, vector<64x64xbf16>, vector<16x64xf32> -> vector<16x64xf32>
    %cst_18 = arith.constant 1.000000e-30 : f32
    %32 = vector.broadcast %cst_18 : f32 to vector<16x64xf32>
    %33 = arith.maximumf %31, %32 : vector<16x64xf32>
    %34 = tpu.reciprocal %33 {approx = true} : vector<16x64xf32> -> vector<16x64xf32>
    %35 = arith.mulf %28, %34 : vector<16x64xf32>
    %36 = arith.truncf %35 : vector<16x64xf32> to vector<16x64xbf16>
    %c0_19 = arith.constant 0 : index
    %c0_20 = arith.constant 0 : index
    %37 = vector.load %arg5[%c0_19, %c0_20] : memref<64x8xbf16, #tpu.memory_space<vmem>>, vector<64x8xbf16>
    %cst_21 = arith.constant dense<0.000000e+00> : vector<16x8xf32>
    %38 = tpu.matmul %36, %37, %cst_21 {dimension_numbers = #tpu.dot_dimension_numbers<[1], [0], [0], [1], [0, 0, 1, 1], [], []>} : vector<16x64xbf16>, vector<64x8xbf16>, vector<16x8xf32> -> vector<16x8xf32>
    %c0_22 = arith.constant 0 : index
    %c0_23 = arith.constant 0 : index
    %39 = vector.load %arg19[%c0_22, %c0_23] : memref<16x8xf32, #tpu.memory_space<vmem>>, vector<16x8xf32>
    tpu.vector_store %arg19[%c0_22, %c0_23], %38 {strides = array<i32>} : memref<16x8xf32, #tpu.memory_space<vmem>>, vector<16x8xf32>,
    %cst_24 = arith.constant dense<0.000000e+00> : vector<16x32xf32>
    %40 = tpu.matmul %36, %19, %cst_24 {dimension_numbers = #tpu.dot_dimension_numbers<[1], [0], [0], [1], [0, 0, 1, 1], [], []>} : vector<16x64xbf16>, vector<64x32xbf16>, vector<16x32xf32> -> vector<16x32xf32>
    %41 = arith.truncf %40 : vector<16x32xf32> to vector<16x32xbf16>
    %c0_25 = arith.constant 0 : index
    %c0_26 = arith.constant 0 : index
    %42 = vector.load %arg8[%c0_25, %c0_26] : memref<32x32xbf16, #tpu.memory_space<vmem>>, vector<32x32xbf16>
    %cst_27 = arith.constant dense<0.000000e+00> : vector<16x32xf32>
    %43 = tpu.matmul %41, %42, %cst_27 {dimension_numbers = #tpu.dot_dimension_numbers<[1], [0], [0], [1], [0, 0, 1, 1], [], []>} : vector<16x32xbf16>, vector<32x32xbf16>, vector<16x32xf32> -> vector<16x32xf32>
    %c0_28 = arith.constant 0 : index
    %c0_29 = arith.constant 0 : index
    %44 = vector.load %arg9[%c0_28, %c0_29] : memref<1x32xf32, #tpu.memory_space<vmem>>, vector<1x32xf32>
    %45 = vector.broadcast %44 : vector<1x32xf32> to vector<16x32xf32>
    %46 = arith.addf %43, %45 : vector<16x32xf32>
    %47 = arith.addf %0, %46 : vector<16x32xf32>
    %c0_30 = arith.constant 0 : index
    %c0_31 = arith.constant 0 : index
    %48 = vector.load %arg10[%c0_30, %c0_31] : memref<1x32xf32, #tpu.memory_space<vmem>>, vector<1x32xf32>
    %c0_32 = arith.constant 0 : index
    %c0_33 = arith.constant 0 : index
    %49 = vector.load %arg11[%c0_32, %c0_33] : memref<1x32xf32, #tpu.memory_space<vmem>>, vector<1x32xf32>
    %cst_34 = arith.constant dense<0.000000e+00> : vector<16xf32>
    %50 = vector.multi_reduction <add>, %47, %cst_34 [1] : vector<16x32xf32> to vector<16xf32>
    %51 = vector.shape_cast %50 : vector<16xf32> to vector<16x1xf32>
    %cst_35 = arith.constant 3.200000e+01 : f32
    %52 = vector.broadcast %cst_35 : f32 to vector<16x1xf32>
    %53 = arith.divf %51, %52 : vector<16x1xf32>
    %54 = vector.broadcast %53 : vector<16x1xf32> to vector<16x32xf32>
    %55 = arith.subf %47, %54 : vector<16x32xf32>
    %56 = arith.mulf %55, %55 : vector<16x32xf32>
    %cst_36 = arith.constant dense<0.000000e+00> : vector<16xf32>
    %57 = vector.multi_reduction <add>, %56, %cst_36 [1] : vector<16x32xf32> to vector<16xf32>
    %58 = vector.shape_cast %57 : vector<16xf32> to vector<16x1xf32>
    %cst_37 = arith.constant 3.200000e+01 : f32
    %59 = vector.broadcast %cst_37 : f32 to vector<16x1xf32>
    %60 = arith.divf %58, %59 : vector<16x1xf32>
    %61 = vector.broadcast %53 : vector<16x1xf32> to vector<16x32xf32>
    %62 = arith.subf %47, %61 : vector<16x32xf32>
    %cst_38 = arith.constant 9.99999997E-7 : f32
    %63 = vector.broadcast %cst_38 : f32 to vector<16x1xf32>
    %64 = arith.addf %60, %63 : vector<16x1xf32>
    %65 = math.rsqrt %64 : vector<16x1xf32>
    %66 = vector.broadcast %65 : vector<16x1xf32> to vector<16x32xf32>
    %67 = arith.mulf %62, %66 : vector<16x32xf32>
    %68 = vector.broadcast %48 : vector<1x32xf32> to vector<16x32xf32>
    %69 = arith.mulf %67, %68 : vector<16x32xf32>
    %70 = vector.broadcast %49 : vector<1x32xf32> to vector<16x32xf32>
    %71 = arith.addf %69, %70 : vector<16x32xf32>
    %72 = arith.truncf %71 : vector<16x32xf32> to vector<16x32xbf16>
    %c0_39 = arith.constant 0 : index
    %c0_40 = arith.constant 0 : index
    %73 = vector.load %arg12[%c0_39, %c0_40] : memref<32x128xbf16, #tpu.memory_space<vmem>>, vector<32x128xbf16>
    %cst_41 = arith.constant dense<0.000000e+00> : vector<16x128xf32>
    %74 = tpu.matmul %72, %73, %cst_41 {dimension_numbers = #tpu.dot_dimension_numbers<[1], [0], [0], [1], [0, 0, 1, 1], [], []>} : vector<16x32xbf16>, vector<32x128xbf16>, vector<16x128xf32> -> vector<16x128xf32>
    %c0_42 = arith.constant 0 : index
    %c0_43 = arith.constant 0 : index
    %75 = vector.load %arg13[%c0_42, %c0_43] : memref<1x128xf32, #tpu.memory_space<vmem>>, vector<1x128xf32>
    %76 = vector.broadcast %75 : vector<1x128xf32> to vector<16x128xf32>
    %77 = arith.addf %74, %76 : vector<16x128xf32>
    %cst_44 = arith.constant 0.000000e+00 : f32
    %78 = vector.broadcast %cst_44 : f32 to vector<16x128xf32>
    %79 = arith.maximumf %77, %78 : vector<16x128xf32>
    %80 = arith.truncf %79 : vector<16x128xf32> to vector<16x128xbf16>
    %c0_45 = arith.constant 0 : index
    %c0_46 = arith.constant 0 : index
    %81 = vector.load %arg14[%c0_45, %c0_46] : memref<128x32xbf16, #tpu.memory_space<vmem>>, vector<128x32xbf16>
    %cst_47 = arith.constant dense<0.000000e+00> : vector<16x32xf32>
    %82 = tpu.matmul %80, %81, %cst_47 {dimension_numbers = #tpu.dot_dimension_numbers<[1], [0], [0], [1], [0, 0, 1, 1], [], []>} : vector<16x128xbf16>, vector<128x32xbf16>, vector<16x32xf32> -> vector<16x32xf32>
    %c0_48 = arith.constant 0 : index
    %c0_49 = arith.constant 0 : index
    %83 = vector.load %arg15[%c0_48, %c0_49] : memref<1x32xf32, #tpu.memory_space<vmem>>, vector<1x32xf32>
    %84 = vector.broadcast %83 : vector<1x32xf32> to vector<16x32xf32>
    %85 = arith.addf %82, %84 : vector<16x32xf32>
    %86 = arith.addf %71, %85 : vector<16x32xf32>
    %c0_50 = arith.constant 0 : index
    %c0_51 = arith.constant 0 : index
    %87 = vector.load %arg16[%c0_50, %c0_51] : memref<1x32xf32, #tpu.memory_space<vmem>>, vector<1x32xf32>
    %c0_52 = arith.constant 0 : index
    %c0_53 = arith.constant 0 : index
    %88 = vector.load %arg17[%c0_52, %c0_53] : memref<1x32xf32, #tpu.memory_space<vmem>>, vector<1x32xf32>
    %cst_54 = arith.constant dense<0.000000e+00> : vector<16xf32>
    %89 = vector.multi_reduction <add>, %86, %cst_54 [1] : vector<16x32xf32> to vector<16xf32>
    %90 = vector.shape_cast %89 : vector<16xf32> to vector<16x1xf32>
    %cst_55 = arith.constant 3.200000e+01 : f32
    %91 = vector.broadcast %cst_55 : f32 to vector<16x1xf32>
    %92 = arith.divf %90, %91 : vector<16x1xf32>
    %93 = vector.broadcast %92 : vector<16x1xf32> to vector<16x32xf32>
    %94 = arith.subf %86, %93 : vector<16x32xf32>
    %95 = arith.mulf %94, %94 : vector<16x32xf32>
    %cst_56 = arith.constant dense<0.000000e+00> : vector<16xf32>
    %96 = vector.multi_reduction <add>, %95, %cst_56 [1] : vector<16x32xf32> to vector<16xf32>
    %97 = vector.shape_cast %96 : vector<16xf32> to vector<16x1xf32>
    %cst_57 = arith.constant 3.200000e+01 : f32
    %98 = vector.broadcast %cst_57 : f32 to vector<16x1xf32>
    %99 = arith.divf %97, %98 : vector<16x1xf32>
    %100 = vector.broadcast %92 : vector<16x1xf32> to vector<16x32xf32>
    %101 = arith.subf %86, %100 : vector<16x32xf32>
    %cst_58 = arith.constant 9.99999997E-7 : f32
    %102 = vector.broadcast %cst_58 : f32 to vector<16x1xf32>
    %103 = arith.addf %99, %102 : vector<16x1xf32>
    %104 = math.rsqrt %103 : vector<16x1xf32>
    %105 = vector.broadcast %104 : vector<16x1xf32> to vector<16x32xf32>
    %106 = arith.mulf %101, %105 : vector<16x32xf32>
    %107 = vector.broadcast %87 : vector<1x32xf32> to vector<16x32xf32>
    %108 = arith.mulf %106, %107 : vector<16x32xf32>
    %109 = vector.broadcast %88 : vector<1x32xf32> to vector<16x32xf32>
    %110 = arith.addf %108, %109 : vector<16x32xf32>
    %c0_59 = arith.constant 0 : index
    %c0_60 = arith.constant 0 : index
    %111 = vector.load %arg18[%c0_59, %c0_60] : memref<16x32xf32, #tpu.memory_space<vmem>>, vector<16x32xf32>
    tpu.vector_store %arg18[%c0_59, %c0_60], %110 {strides = array<i32>} : memref<16x32xf32, #tpu.memory_space<vmem>>, vector<16x32xf32>,
    return
  }
}

</mosaic_0001>

<llo_original>
// kernel: tpu_custom_call.1
$region0: #{tpu_custom_call.1}
  #allocation0 [shape = 'u32[]', space=smem, size = 0x4, offset = 0x4, fixed_abs, tag = 'smem constant byte address 0x4 - core index']
  #allocation1 [shape = 'u32[144,128]{1,0:T(1,128)}', space=vmem, size = 0x12000, scoped, tag = 'internal scratch']
  %s0 = inlined_call_operand.vmem [shape: f32[16,32], index: 0, kind: input, shape index: {}]
  %s1 = inlined_call_operand.vmem [shape: f32[16,64], index: 1, kind: input, shape index: {}]
  %s2 = inlined_call_operand.vmem [shape: f32[64,32], index: 2, kind: input, shape index: {}]
  %s3 = inlined_call_operand.vmem [shape: bf16[64,16], index: 3, kind: input, shape index: {}]
  %s4 = inlined_call_operand.vmem [shape: bf16[64,64], index: 4, kind: input, shape index: {}]
  %s5 = inlined_call_operand.vmem [shape: bf16[64,8], index: 5, kind: input, shape index: {}]
  %s6 = inlined_call_operand.vmem [shape: bf16[32,96], index: 6, kind: input, shape index: {}]
  %s7 = inlined_call_operand.vmem [shape: f32[1,96], index: 7, kind: input, shape index: {}]
  %s8 = inlined_call_operand.vmem [shape: bf16[32,32], index: 8, kind: input, shape index: {}]
  %s9 = inlined_call_operand.vmem [shape: f32[1,32], index: 9, kind: input, shape index: {}]
  %s10 = inlined_call_operand.vmem [shape: f32[1,32], index: 10, kind: input, shape index: {}]
  %s11 = inlined_call_operand.vmem [shape: f32[1,32], index: 11, kind: input, shape index: {}]
  %s12 = inlined_call_operand.vmem [shape: bf16[32,128], index: 12, kind: input, shape index: {}]
  %s13 = inlined_call_operand.vmem [shape: f32[1,128], index: 13, kind: input, shape index: {}]
  %s14 = inlined_call_operand.vmem [shape: bf16[128,32], index: 14, kind: input, shape index: {}]
  %s15 = inlined_call_operand.vmem [shape: f32[1,32], index: 15, kind: input, shape index: {}]
  %s16 = inlined_call_operand.vmem [shape: f32[1,32], index: 16, kind: input, shape index: {}]
  %s17 = inlined_call_operand.vmem [shape: f32[1,32], index: 17, kind: input, shape index: {}]
  %s18 = inlined_call_operand.hbm [shape: f32[16,32], index: 18, kind: output, shape index: {0}]
  %s19 = inlined_call_operand.vmem [shape: f32[16,8], index: 19, kind: output, shape index: {1}]
  %20 = xla_tuple %s18, %s19
  %s21 = sld [smem:[#allocation0]]
  $region90: #{tpu_custom_call.1} parent=0
    _
  %s23 = ssub.s32 1, %s21
  %s24 = scalar_select 0, %s23, %s21
  $region1: #{tpu_custom_call.1} parent=0
    #allocation2 [shape = 'u8[8192]{0}', space=vmem, size = 0x2000, scoped, tag = 'output window, operand 0, single buffered']
    #allocation3 [shape = 's32[1]{0}', space=sflag, size = 0x4, scoped, tag = 'scoped memory for tpu_custom_call.1']
    %25 = vsyncpa [#allocation3], 0
    // Predicated region
    $region2: #{tpu_custom_call.1} parent=1 // pred_check
      _
    $region3: #{tpu_custom_call.1} parent=1 // pred_check_branch
      %27 = sbr.rel (0) target = $region5
    $region4: #{tpu_custom_call.1} parent=1 // pred_region
      _
    $region5: #{tpu_custom_call.1} parent=1 // pred_fallthru
      _
    // Predicated region
    $region6: #{tpu_custom_call.1} parent=1 // pred_check
      _
    $region7: #{tpu_custom_call.1} parent=1 // pred_check_branch
      %29 = sbr.rel (0) target = $region9
    $region8: #{tpu_custom_call.1} parent=1 // pred_region
      _
    $region9: #{tpu_custom_call.1} parent=1 // pred_fallthru
      _
    // Predicated region
    $region10: #{tpu_custom_call.1} parent=1 // pred_check
      _
    $region11: #{tpu_custom_call.1} parent=1 // pred_check_branch
      %31 = sbr.rel (0) target = $region13
    $region12: #{tpu_custom_call.1} parent=1 // pred_region
      _
    $region13: #{tpu_custom_call.1} parent=1 // pred_fallthru
      _
    // Predicated region
    $region14: #{tpu_custom_call.1} parent=1 // pred_check
      _
    $region15: #{tpu_custom_call.1} parent=1 // pred_check_branch
      %33 = sbr.rel (0) target = $region17
    $region16: #{tpu_custom_call.1} parent=1 // pred_region
      _
    $region17: #{tpu_custom_call.1} parent=1 // pred_fallthru
      _
    // Predicated region
    $region18: #{tpu_custom_call.1} parent=1 // pred_check
      _
    $region19: #{tpu_custom_call.1} parent=1 // pred_check_branch
      %35 = sbr.rel (0) target = $region21
    $region20: #{tpu_custom_call.1} parent=1 // pred_region
      _
    $region21: #{tpu_custom_call.1} parent=1 // pred_fallthru
      _
    // Predicated region
    $region22: #{tpu_custom_call.1} parent=1 // pred_check
      _
    $region23: #{tpu_custom_call.1} parent=1 // pred_check_branch
      %37 = sbr.rel (0) target = $region25
    $region24: #{tpu_custom_call.1} parent=1 // pred_region
      _
    $region25: #{tpu_custom_call.1} parent=1 // pred_fallthru
      _
    // Predicated region
    $region26: #{tpu_custom_call.1} parent=1 // pred_check
      _
    $region27: #{tpu_custom_call.1} parent=1 // pred_check_branch
      %39 = sbr.rel (0) target = $region29
    $region28: #{tpu_custom_call.1} parent=1 // pred_region
      _
    $region29: #{tpu_custom_call.1} parent=1 // pred_fallthru
      _
    // Predicated region
    $region30: #{tpu_custom_call.1} parent=1 // pred_check
      _
    $region31: #{tpu_custom_call.1} parent=1 // pred_check_branch
      %41 = sbr.rel (0) target = $region33
    $region32: #{tpu_custom_call.1} parent=1 // pred_region
      _
    $region33: #{tpu_custom_call.1} parent=1 // pred_fallthru
      _
    // Predicated region
    $region34: #{tpu_custom_call.1} parent=1 // pred_check
      _
    $region35: #{tpu_custom_call.1} parent=1 // pred_check_branch
      %43 = sbr.rel (0) target = $region37
    $region36: #{tpu_custom_call.1} parent=1 // pred_region
      _
    $region37: #{tpu_custom_call.1} parent=1 // pred_fallthru
      _
    // Predicated region
    $region38: #{tpu_custom_call.1} parent=1 // pred_check
      _
    $region39: #{tpu_custom_call.1} parent=1 // pred_check_branch
      %45 = sbr.rel (0) target = $region41
    $region40: #{tpu_custom_call.1} parent=1 // pred_region
      _
    $region41: #{tpu_custom_call.1} parent=1 // pred_fallthru
      _
    // Predicated region
    $region42: #{tpu_custom_call.1} parent=1 // pred_check
      _
    $region43: #{tpu_custom_call.1} parent=1 // pred_check_branch
      %47 = sbr.rel (0) target = $region45
    $region44: #{tpu_custom_call.1} parent=1 // pred_region
      _
    $region45: #{tpu_custom_call.1} parent=1 // pred_fallthru
      _
    // Predicated region
    $region46: #{tpu_custom_call.1} parent=1 // pred_check
      _
    $region47: #{tpu_custom_call.1} parent=1 // pred_check_branch
      %49 = sbr.rel (0) target = $region49
    $region48: #{tpu_custom_call.1} parent=1 // pred_region
      _
    $region49: #{tpu_custom_call.1} parent=1 // pred_fallthru
      _
    // Predicated region
    $region50: #{tpu_custom_call.1} parent=1 // pred_check
      _
    $region51: #{tpu_custom_call.1} parent=1 // pred_check_branch
      %51 = sbr.rel (0) target = $region53
    $region52: #{tpu_custom_call.1} parent=1 // pred_region
      _
    $region53: #{tpu_custom_call.1} parent=1 // pred_fallthru
      _
    // Predicated region
    $region54: #{tpu_custom_call.1} parent=1 // pred_check
      _
    $region55: #{tpu_custom_call.1} parent=1 // pred_check_branch
      %53 = sbr.rel (0) target = $region57
    $region56: #{tpu_custom_call.1} parent=1 // pred_region
      _
    $region57: #{tpu_custom_call.1} parent=1 // pred_fallthru
      _
    // Predicated region
    $region58: #{tpu_custom_call.1} parent=1 // pred_check
      _
    $region59: #{tpu_custom_call.1} parent=1 // pred_check_branch
      %55 = sbr.rel (0) target = $region61
    $region60: #{tpu_custom_call.1} parent=1 // pred_region
      _
    $region61: #{tpu_custom_call.1} parent=1 // pred_fallthru
      _
    // Predicated region
    $region62: #{tpu_custom_call.1} parent=1 // pred_check
      _
    $region63: #{tpu_custom_call.1} parent=1 // pred_check_branch
      %57 = sbr.rel (0) target = $region65
    $region64: #{tpu_custom_call.1} parent=1 // pred_region
      _
    $region65: #{tpu_custom_call.1} parent=1 // pred_fallthru
      _
    // Predicated region
    $region66: #{tpu_custom_call.1} parent=1 // pred_check
      _
    $region67: #{tpu_custom_call.1} parent=1 // pred_check_branch
      %59 = sbr.rel (0) target = $region69
    $region68: #{tpu_custom_call.1} parent=1 // pred_region
      _
    $region69: #{tpu_custom_call.1} parent=1 // pred_fallthru
      _
    // Predicated region
    $region70: #{tpu_custom_call.1} parent=1 // pred_check
      _
    $region71: #{tpu_custom_call.1} parent=1 // pred_check_branch
      %61 = sbr.rel (0) target = $region73
    $region72: #{tpu_custom_call.1} parent=1 // pred_region
      _
    $region73: #{tpu_custom_call.1} parent=1 // pred_fallthru
      _
    %v63 = vld [vmem:[%s0] sm:$0xff]
    %v64 = vld [vmem:[%s0 + $0x8] sm:$0xff]
    %v65 = vpack.c.bf16 %v64, %v63
    %v66 = vld [vmem:[%s6] sm:$0xf]
    %v67 = vld [vmem:[%s6 + $0x4] sm:$0xf]
    %v68 = vld [vmem:[%s6 + $0x8] sm:$0xf]
    %v69 = vld [vmem:[%s6 + $0xc] sm:$0xf]
    %v70 = vld [vmem:[%s7] sm:$0x1]
    %v72 = vlaneseq
    %v73 = vshrl.u32 %v72, 7
    %v74 = vsub.s32 0, %v73
    %v75 = vrot.slane %v70, %v74
    %v81 = vunpack.c.l.b16 %v66
    %v82 = vunpack.c.l.b16 %v67
    %v83 = vunpack.c.l.b16 %v68
    %v84 = vunpack.c.l.b16 %v69
    %v85 = vpack.c.b16 %v82, %v81
    %v86 = vpack.c.b16 %v84, %v83
    %vm89 = vcmask 261120
    %v91 = vsel %vm89, %v65, 0
    %93 = vmatprep.subr.bf16.mxu0 0
    %94 = vmatpush1.bf16.msra.mxu0 0
    %95 = vmatprep.subr.bf16.mxu0 0
    %96 = vmatpush1.bf16.msra.mxu0 0
    %97 = vmatprep.subr.bf16.mxu0 0
    %98 = vmatpush1.bf16.msra.mxu0 0
    %99 = vmatprep.subr.bf16.mxu0 0
    %100 = vmatpush1.bf16.msra.mxu0 0
    %101 = vmatprep.subr.bf16.mxu0 0
    %102 = vmatpush1.bf16.msra.mxu0 0
    %103 = vmatprep.subr.bf16.mxu0 0
    %104 = vmatpush1.bf16.msra.mxu0 0
    %105 = vmatprep.subr.bf16.mxu0 0
    %106 = vmatpush1.bf16.msra.mxu0 %v86
    %107 = vmatprep.subr.bf16.mxu0 0
    %108 = vmatpush1.bf16.msra.mxu0 %v85
    %109 = vmatprep.subr.bf16.mxu0 0
    %110 = vmatpush2.bf16.msra.mxu0 0
    %111 = vmatprep.subr.bf16.mxu0 0
    %112 = vmatpush2.bf16.msra.mxu0 0
    %113 = vmatprep.subr.bf16.mxu0 0
    %114 = vmatpush2.bf16.msra.mxu0 0
    %115 = vmatprep.subr.bf16.mxu0 0
    %116 = vmatpush2.bf16.msra.mxu0 0
    %117 = vmatprep.subr.bf16.mxu0 0
    %118 = vmatpush2.bf16.msra.mxu0 0
    %119 = vmatprep.subr.bf16.mxu0 0
    %120 = vmatpush2.bf16.msra.mxu0 0
    %121 = vmatprep.subr.bf16.mxu0 0
    %122 = vmatpush2.bf16.msra.mxu0 0
    %123 = vmatprep.subr.bf16.mxu0 0
    %124 = vmatpush2.bf16.msra.mxu0 0
    %125 = vmatprep.mubr.bf16.mxu0 0
    %126 = vmatmul.mubr.bf16.gmra.mxu0 %v91
    %v127 = vpop.f32.mrf.mxu0
    %v128 = vadd.f32 %v75, %v127
    %v129 = vpop.f32.mrf.mxu0
    %v130 = vpop.f32.mrf.mxu0
    %v131 = vadd.f32 %v75, %v130
    %v132 = vpop.f32.mrf.mxu0
    %133 = vdwg.mxu0
    %v134 = vld [vmem:[%s2] sm:$0xff]
    %v135 = vld [vmem:[%s2 + $0x8] sm:$0xff]
    %v136 = vld [vmem:[%s2 + $0x10] sm:$0xff]
    %v137 = vld [vmem:[%s2 + $0x18] sm:$0xff]
    %v138 = vld [vmem:[%s2 + $0x20] sm:$0xff]
    %v139 = vld [vmem:[%s2 + $0x28] sm:$0xff]
    %v140 = vld [vmem:[%s2 + $0x30] sm:$0xff]
    %v141 = vld [vmem:[%s2 + $0x38] sm:$0xff]
    %v142 = vld [vmem:[%s3] sm:$0xf]
    %v143 = vld [vmem:[%s3 + $0x4] sm:$0xf]
    %v144 = vld [vmem:[%s3 + $0x8] sm:$0xf]
    %v145 = vld [vmem:[%s3 + $0xc] sm:$0xf]
    %v146 = vld [vmem:[%s3 + $0x10] sm:$0xf]
    %v147 = vld [vmem:[%s3 + $0x14] sm:$0xf]
    %v148 = vld [vmem:[%s3 + $0x18] sm:$0xf]
    %v149 = vld [vmem:[%s3 + $0x1c] sm:$0xf]
    %v150 = vpack.c.bf16 %v131, %v128
    %v159 = vunpack.c.l.b16 %v142
    %v160 = vunpack.c.l.b16 %v143
    %v161 = vunpack.c.l.b16 %v144
    %v162 = vunpack.c.l.b16 %v145
    %v163 = vunpack.c.l.b16 %v146
    %v164 = vunpack.c.l.b16 %v147
    %v165 = vunpack.c.l.b16 %v148
    %v166 = vunpack.c.l.b16 %v149
    %v167 = vpack.c.b16 %v160, %v159
    %v168 = vpack.c.b16 %v162, %v161
    %v169 = vpack.c.b16 %v164, %v163
    %v170 = vpack.c.b16 %v166, %v165
    %172 = vrot.lane.b32.xlu0 %v150, 96
    %v173 = vpop.permute.xlu0 %172
    %vm175 = vcmask 130048
    %v177 = vsel %vm175, %v167, 0
    %v180 = vsel %vm175, %v168, 0
    %v183 = vsel %vm175, %v169, 0
    %v186 = vsel %vm175, %v170, 0
    %188 = vmatprep.subr.bf16.mxu0 0
    %189 = vmatpush1.bf16.msra.mxu0 0
    %190 = vmatprep.subr.bf16.mxu0 0
    %191 = vmatpush1.bf16.msra.mxu0 0
    %192 = vmatprep.subr.bf16.mxu0 0
    %193 = vmatpush1.bf16.msra.mxu0 0
    %194 = vmatprep.subr.bf16.mxu0 0
    %195 = vmatpush1.bf16.msra.mxu0 0
    %196 = vmatprep.subr.bf16.mxu0 0
    %197 = vmatpush1.bf16.msra.mxu0 0
    %198 = vmatprep.subr.bf16.mxu0 0
    %199 = vmatpush1.bf16.msra.mxu0 0
    %200 = vmatprep.subr.bf16.mxu0 0
    %201 = vmatpush1.bf16.msra.mxu0 0
    %202 = vmatprep.subr.bf16.mxu0 0
    %203 = vmatpush1.bf16.msra.mxu0 %v173
    %204 = vmatprep.subr.bf16.mxu0 0
    %205 = vmatpush2.bf16.msra.mxu0 0
    %206 = vmatprep.subr.bf16.mxu0 0
    %207 = vmatpush2.bf16.msra.mxu0 0
    %208 = vmatprep.subr.bf16.mxu0 0
    %209 = vmatpush2.bf16.msra.mxu0 0
    %210 = vmatprep.subr.bf16.mxu0 0
    %211 = vmatpush2.bf16.msra.mxu0 0
    %212 = vmatprep.subr.bf16.mxu0 0
    %213 = vmatpush2.bf16.msra.mxu0 0
    %214 = vmatprep.subr.bf16.mxu0 0
    %215 = vmatpush2.bf16.msra.mxu0 0
    %216 = vmatprep.subr.bf16.mxu0 0
    %217 = vmatpush2.bf16.msra.mxu0 0
    %218 = vmatprep.subr.bf16.mxu0 0
    %219 = vmatpush2.bf16.msra.mxu0 0
    %220 = vmatprep.mubr.bf16.mxu0 0
    %221 = vmatmul.mubr.bf16.gmra.mxu0 %v177
    %v222 = vpop.f32.mrf.mxu0
    %v223 = vadd.f32 0.0, %v222
    %v224 = vpop.f32.mrf.mxu0
    %v225 = vpop.f32.mrf.mxu0
    %v226 = vadd.f32 0.0, %v225
    %v227 = vpop.f32.mrf.mxu0
    %228 = vmatprep.mubr.bf16.mxu0 0
    %229 = vmatmul.mubr.bf16.gmra.mxu0 %v180
    %v230 = vpop.f32.mrf.mxu0
    %v231 = vadd.f32 0.0, %v230
    %v232 = vpop.f32.mrf.mxu0
    %v233 = vpop.f32.mrf.mxu0
    %v234 = vadd.f32 0.0, %v233
    %v235 = vpop.f32.mrf.mxu0
    %236 = vmatprep.mubr.bf16.mxu0 0
    %237 = vmatmul.mubr.bf16.gmra.mxu0 %v183
    %v238 = vpop.f32.mrf.mxu0
    %v239 = vadd.f32 0.0, %v238
    %v240 = vpop.f32.mrf.mxu0
    %v241 = vpop.f32.mrf.mxu0
    %v242 = vadd.f32 0.0, %v241
    %v243 = vpop.f32.mrf.mxu0
    %244 = vmatprep.mubr.bf16.mxu0 0
    %245 = vmatmul.mubr.bf16.gmra.mxu0 %v186
    %v246 = vpop.f32.mrf.mxu0
    %v247 = vadd.f32 0.0, %v246
    %v248 = vpop.f32.mrf.mxu0
    %v249 = vpop.f32.mrf.mxu0
    %v250 = vadd.f32 0.0, %v249
    %v251 = vpop.f32.mrf.mxu0
    %252 = vdwg.mxu0
    %v253 = vmul.f32 %v223, %v134
    %v254 = vmul.f32 %v226, %v135
    %v255 = vmul.f32 %v231, %v136
    %v256 = vmul.f32 %v234, %v137
    %v257 = vmul.f32 %v239, %v138
    %v258 = vmul.f32 %v242, %v139
    %v259 = vmul.f32 %v247, %v140
    %v260 = vmul.f32 %v250, %v141
    %v261 = vpack.c.bf16 %v254, %v253
    %v262 = vpack.c.bf16 %v256, %v255
    %v263 = vpack.c.bf16 %v258, %v257
    %v264 = vpack.c.bf16 %v260, %v259
    %265 = vrot.lane.b32.xlu0 %v150, 64
    %v266 = vpop.permute.xlu0 %265
    %268 = vmatprep.subr.bf16.mxu0 0
    %269 = vmatpush1.bf16.msra.mxu0 0
    %270 = vmatprep.subr.bf16.mxu0 0
    %271 = vmatpush1.bf16.msra.mxu0 0
    %272 = vmatprep.subr.bf16.mxu0 0
    %273 = vmatpush1.bf16.msra.mxu0 0
    %274 = vmatprep.subr.bf16.mxu0 0
    %275 = vmatpush1.bf16.msra.mxu0 0
    %276 = vmatprep.subr.bf16.mxu0 0
    %277 = vmatpush1.bf16.msra.mxu0 0
    %278 = vmatprep.subr.bf16.mxu0 0
    %279 = vmatpush1.bf16.msra.mxu0 0
    %280 = vmatprep.subr.bf16.mxu0 0
    %281 = vmatpush1.bf16.msra.mxu0 0
    %282 = vmatprep.subr.bf16.mxu0 0
    %283 = vmatpush1.bf16.msra.mxu0 %v266
    %284 = vmatprep.subr.bf16.mxu0 0
    %285 = vmatpush2.bf16.msra.mxu0 0
    %286 = vmatprep.subr.bf16.mxu0 0
    %287 = vmatpush2.bf16.msra.mxu0 0
    %288 = vmatprep.subr.bf16.mxu0 0
    %289 = vmatpush2.bf16.msra.mxu0 0
    %290 = vmatprep.subr.bf16.mxu0 0
    %291 = vmatpush2.bf16.msra.mxu0 0
    %292 = vmatprep.subr.bf16.mxu0 0
    %293 = vmatpush2.bf16.msra.mxu0 0
    %294 = vmatprep.subr.bf16.mxu0 0
    %295 = vmatpush2.bf16.msra.mxu0 0
    %296 = vmatprep.subr.bf16.mxu0 0
    %297 = vmatpush2.bf16.msra.mxu0 0
    %298 = vmatprep.subr.bf16.mxu0 0
    %299 = vmatpush2.bf16.msra.mxu0 0
    %300 = vmatprep.mubr.bf16.mxu0 0
    %301 = vmatmul.mubr.bf16.gmra.mxu0 %v177
    %v302 = vpop.f32.mrf.mxu0
    %v303 = vadd.f32 0.0, %v302
    %v304 = vpop.f32.mrf.mxu0
    %v305 = vpop.f32.mrf.mxu0
    %v306 = vadd.f32 0.0, %v305
    %v307 = vpop.f32.mrf.mxu0
    %308 = vmatprep.mubr.bf16.mxu0 0
    %309 = vmatmul.mubr.bf16.gmra.mxu0 %v180
    %v310 = vpop.f32.mrf.mxu0
    %v311 = vadd.f32 0.0, %v310
    %v312 = vpop.f32.mrf.mxu0
    %v313 = vpop.f32.mrf.mxu0
    %v314 = vadd.f32 0.0, %v313
    %v315 = vpop.f32.mrf.mxu0
    %316 = vmatprep.mubr.bf16.mxu0 0
    %317 = vmatmul.mubr.bf16.gmra.mxu0 %v183
    %v318 = vpop.f32.mrf.mxu0
    %v319 = vadd.f32 0.0, %v318
    %v320 = vpop.f32.mrf.mxu0
    %v321 = vpop.f32.mrf.mxu0
    %v322 = vadd.f32 0.0, %v321
    %v323 = vpop.f32.mrf.mxu0
    %324 = vmatprep.mubr.bf16.mxu0 0
    %325 = vmatmul.mubr.bf16.gmra.mxu0 %v186
    %v326 = vpop.f32.mrf.mxu0
    %v327 = vadd.f32 0.0, %v326
    %v328 = vpop.f32.mrf.mxu0
    %v329 = vpop.f32.mrf.mxu0
    %v330 = vadd.f32 0.0, %v329
    %v331 = vpop.f32.mrf.mxu0
    %332 = vdwg.mxu0
    %v333 = vmul.f32 %v303, %v134
    %v334 = vmul.f32 %v306, %v135
    %v335 = vmul.f32 %v311, %v136
    %v336 = vmul.f32 %v314, %v137
    %v337 = vmul.f32 %v319, %v138
    %v338 = vmul.f32 %v322, %v139
    %v339 = vmul.f32 %v327, %v140
    %v340 = vmul.f32 %v330, %v141
    %v341 = vpack.c.bf16 %v334, %v333
    %v342 = vpack.c.bf16 %v336, %v335
    %v343 = vpack.c.bf16 %v338, %v337
    %v344 = vpack.c.bf16 %v340, %v339
    %v345 = vld [vmem:[%s1] sm:$0xff]
    %v346 = vld [vmem:[%s1 + $0x8] sm:$0xff]
    %v348 = vsel %vm89, %v150, 0
    %v351 = vsel %vm89, %v261, 0
    %v354 = vsel %vm89, %v262, 0
    %v357 = vsel %vm89, %v263, 0
    %v360 = vsel %vm89, %v264, 0
    %362 = vmatprep.subr.bf16.mxu0 0
    %363 = vmatpush1.bf16.xpose.msra.mxu0 0
    %364 = vmatprep.subr.bf16.mxu0 0
    %365 = vmatpush1.bf16.xpose.msra.mxu0 0
    %366 = vmatprep.subr.bf16.mxu0 0
    %367 = vmatpush1.bf16.xpose.msra.mxu0 0
    %368 = vmatprep.subr.bf16.mxu0 0
    %369 = vmatpush1.bf16.xpose.msra.mxu0 0
    %370 = vmatprep.subr.bf16.mxu0 0
    %371 = vmatpush1.bf16.xpose.msra.mxu0 %v360
    %372 = vmatprep.subr.bf16.mxu0 0
    %373 = vmatpush1.bf16.xpose.msra.mxu0 %v357
    %374 = vmatprep.subr.bf16.mxu0 0
    %375 = vmatpush1.bf16.xpose.msra.mxu0 %v354
    %376 = vmatprep.subr.bf16.mxu0 0
    %377 = vmatpush1.bf16.xpose.msra.mxu0 %v351
    %378 = vmatprep.subr.bf16.mxu0 0
    %379 = vmatpush2.bf16.xpose.msra.mxu0 0
    %380 = vmatprep.subr.bf16.mxu0 0
    %381 = vmatpush2.bf16.xpose.msra.mxu0 0
    %382 = vmatprep.subr.bf16.mxu0 0
    %383 = vmatpush2.bf16.xpose.msra.mxu0 0
    %384 = vmatprep.subr.bf16.mxu0 0
    %385 = vmatpush2.bf16.xpose.msra.mxu0 0
    %386 = vmatprep.subr.bf16.mxu0 0
    %387 = vmatpush2.bf16.xpose.msra.mxu0 0
    %388 = vmatprep.subr.bf16.mxu0 0
    %389 = vmatpush2.bf16.xpose.msra.mxu0 0
    %390 = vmatprep.subr.bf16.mxu0 0
    %391 = vmatpush2.bf16.xpose.msra.mxu0 0
    %392 = vmatprep.subr.bf16.mxu0 0
    %393 = vmatpush2.bf16.xpose.msra.mxu0 0
    %394 = vmatprep.mubr.bf16.mxu0 0
    %395 = vmatmul.mubr.bf16.gmra.mxu0 %v348
    %v396 = vpop.f32.mrf.mxu0
    %v397 = vadd.f32 %v345, %v396
    %v398 = vpop.f32.mrf.mxu0
    %v399 = vpop.f32.mrf.mxu0
    %v400 = vadd.f32 %v346, %v399
    %v401 = vpop.f32.mrf.mxu0
    %402 = vdwg.mxu0
    %vm403 = vcmask 523264
    %v404 = vsel %vm403, %v397, -inf
    %405 = vmax.xlane.f32.xlu0 %v404
    %v406 = vpop.xlane.xlu0 %405
    %v407 = vsel %vm403, %v400, -inf
    %408 = vmax.xlane.f32.xlu0 %v407
    %v409 = vpop.xlane.xlu0 %408
    %v410 = vsub.f32 %v397, %v406
    %v411 = vsub.f32 %v400, %v409
    %v412 = vmul.f32 %v410, 1.442695
    %v413 = vpow.pop %v412
    %v414 = vmul.f32 %v411, 1.442695
    %v415 = vpow.pop %v414
    %v416 = vpack.c.bf16 %v415, %v413
    %v417 = vld [vmem:[%s4] sm:$0xf]
    %v418 = vld [vmem:[%s4 + $0x4] sm:$0xf]
    %v419 = vld [vmem:[%s4 + $0x8] sm:$0xf]
    %v420 = vld [vmem:[%s4 + $0xc] sm:$0xf]
    %v421 = vld [vmem:[%s4 + $0x10] sm:$0xf]
    %v422 = vld [vmem:[%s4 + $0x14] sm:$0xf]
    %v423 = vld [vmem:[%s4 + $0x18] sm:$0xf]
    %v424 = vld [vmem:[%s4 + $0x1c] sm:$0xf]
    %v433 = vunpack.c.l.b16 %v417
    %v434 = vunpack.c.l.b16 %v418
    %v435 = vunpack.c.l.b16 %v419
    %v436 = vunpack.c.l.b16 %v420
    %v437 = vunpack.c.l.b16 %v421
    %v438 = vunpack.c.l.b16 %v422
    %v439 = vunpack.c.l.b16 %v423
    %v440 = vunpack.c.l.b16 %v424
    %v441 = vpack.c.b16 %v434, %v433
    %v442 = vpack.c.b16 %v436, %v435
    %v443 = vpack.c.b16 %v438, %v437
    %v444 = vpack.c.b16 %v440, %v439
    %v450 = vsel %vm403, %v416, 0
    %452 = vmatprep.subr.bf16.mxu0 0
    %453 = vmatpush1.bf16.msra.mxu0 0
    %454 = vmatprep.subr.bf16.mxu0 0
    %455 = vmatpush1.bf16.msra.mxu0 0
    %456 = vmatprep.subr.bf16.mxu0 0
    %457 = vmatpush1.bf16.msra.mxu0 0
    %458 = vmatprep.subr.bf16.mxu0 0
    %459 = vmatpush1.bf16.msra.mxu0 0
    %460 = vmatprep.subr.bf16.mxu0 0
    %461 = vmatpush1.bf16.msra.mxu0 %v444
    %462 = vmatprep.subr.bf16.mxu0 0
    %463 = vmatpush1.bf16.msra.mxu0 %v443
    %464 = vmatprep.subr.bf16.mxu0 0
    %465 = vmatpush1.bf16.msra.mxu0 %v442
    %466 = vmatprep.subr.bf16.mxu0 0
    %467 = vmatpush1.bf16.msra.mxu0 %v441
    %468 = vmatprep.subr.bf16.mxu0 0
    %469 = vmatpush2.bf16.msra.mxu0 0
    %470 = vmatprep.subr.bf16.mxu0 0
    %471 = vmatpush2.bf16.msra.mxu0 0
    %472 = vmatprep.subr.bf16.mxu0 0
    %473 = vmatpush2.bf16.msra.mxu0 0
    %474 = vmatprep.subr.bf16.mxu0 0
    %475 = vmatpush2.bf16.msra.mxu0 0
    %476 = vmatprep.subr.bf16.mxu0 0
    %477 = vmatpush2.bf16.msra.mxu0 0
    %478 = vmatprep.subr.bf16.mxu0 0
    %479 = vmatpush2.bf16.msra.mxu0 0
    %480 = vmatprep.subr.bf16.mxu0 0
    %481 = vmatpush2.bf16.msra.mxu0 0
    %482 = vmatprep.subr.bf16.mxu0 0
    %483 = vmatpush2.bf16.msra.mxu0 0
    %484 = vmatprep.mubr.bf16.mxu0 0
    %485 = vmatmul.mubr.bf16.gmra.mxu0 %v450
    %v486 = vpop.f32.mrf.mxu0
    %v487 = vadd.f32 0.0, %v486
    %v488 = vpop.f32.mrf.mxu0
    %v489 = vpop.f32.mrf.mxu0
    %v490 = vadd.f32 0.0, %v489
    %v491 = vpop.f32.mrf.mxu0
    %492 = vdwg.mxu0
    %v493 = vmax.f32 %v487, 1e-30
    %v494 = vmax.f32 %v490, 1e-30
    %v495 = vrcp.pop %v493
    %v496 = vrcp.pop %v494
    %v497 = vmul.f32 %v413, %v495
    %v498 = vmul.f32 %v415, %v496
    %v499 = vpack.c.bf16 %v498, %v497
    %v500 = vld [vmem:[%s5] sm:$0xf]
    %v501 = vld [vmem:[%s5 + $0x4] sm:$0xf]
    %v502 = vld [vmem:[%s5 + $0x8] sm:$0xf]
    %v503 = vld [vmem:[%s5 + $0xc] sm:$0xf]
    %v504 = vld [vmem:[%s5 + $0x10] sm:$0xf]
    %v505 = vld [vmem:[%s5 + $0x14] sm:$0xf]
    %v506 = vld [vmem:[%s5 + $0x18] sm:$0xf]
    %v507 = vld [vmem:[%s5 + $0x1c] sm:$0xf]
    %v516 = vunpack.c.l.b16 %v500
    %v517 = vunpack.c.l.b16 %v501
    %v518 = vunpack.c.l.b16 %v502
    %v519 = vunpack.c.l.b16 %v503
    %v520 = vunpack.c.l.b16 %v504
    %v521 = vunpack.c.l.b16 %v505
    %v522 = vunpack.c.l.b16 %v506
    %v523 = vunpack.c.l.b16 %v507
    %v524 = vpack.c.b16 %v517, %v516
    %v525 = vpack.c.b16 %v519, %v518
    %v526 = vpack.c.b16 %v521, %v520
    %v527 = vpack.c.b16 %v523, %v522
    %v533 = vsel %vm403, %v499, 0
    %535 = vmatprep.subr.bf16.mxu0 0
    %536 = vmatpush1.bf16.msra.mxu0 0
    %537 = vmatprep.subr.bf16.mxu0 0
    %538 = vmatpush1.bf16.msra.mxu0 0
    %539 = vmatprep.subr.bf16.mxu0 0
    %540 = vmatpush1.bf16.msra.mxu0 0
    %541 = vmatprep.subr.bf16.mxu0 0
    %542 = vmatpush1.bf16.msra.mxu0 0
    %543 = vmatprep.subr.bf16.mxu0 0
    %544 = vmatpush1.bf16.msra.mxu0 %v527
    %545 = vmatprep.subr.bf16.mxu0 0
    %546 = vmatpush1.bf16.msra.mxu0 %v526
    %547 = vmatprep.subr.bf16.mxu0 0
    %548 = vmatpush1.bf16.msra.mxu0 %v525
    %549 = vmatprep.subr.bf16.mxu0 0
    %550 = vmatpush1.bf16.msra.mxu0 %v524
    %551 = vmatprep.subr.bf16.mxu0 0
    %552 = vmatpush2.bf16.msra.mxu0 0
    %553 = vmatprep.subr.bf16.mxu0 0
    %554 = vmatpush2.bf16.msra.mxu0 0
    %555 = vmatprep.subr.bf16.mxu0 0
    %556 = vmatpush2.bf16.msra.mxu0 0
    %557 = vmatprep.subr.bf16.mxu0 0
    %558 = vmatpush2.bf16.msra.mxu0 0
    %559 = vmatprep.subr.bf16.mxu0 0
    %560 = vmatpush2.bf16.msra.mxu0 0
    %561 = vmatprep.subr.bf16.mxu0 0
    %562 = vmatpush2.bf16.msra.mxu0 0
    %563 = vmatprep.subr.bf16.mxu0 0
    %564 = vmatpush2.bf16.msra.mxu0 0
    %565 = vmatprep.subr.bf16.mxu0 0
    %566 = vmatpush2.bf16.msra.mxu0 0
    %567 = vmatprep.mubr.bf16.mxu0 0
    %568 = vmatmul.mubr.bf16.gmra.mxu0 %v533
    %v569 = vpop.f32.mrf.mxu0
    %v570 = vadd.f32 0.0, %v569
    %v571 = vpop.f32.mrf.mxu0
    %v572 = vpop.f32.mrf.mxu0
    %v573 = vadd.f32 0.0, %v572
    %v574 = vpop.f32.mrf.mxu0
    %575 = vdwg.mxu0
    %vm576 = vcmask 64512
    %577 = vst.msk [vmem:[%s19] sm:$0xff] %vm576, %v570
    %578 = vst.msk [vmem:[%s19 + $0x8] sm:$0xff] %vm576, %v573
    %579 = vmatprep.subr.bf16.mxu0 0
    %580 = vmatpush1.bf16.msra.mxu0 0
    %581 = vmatprep.subr.bf16.mxu0 0
    %582 = vmatpush1.bf16.msra.mxu0 0
    %583 = vmatprep.subr.bf16.mxu0 0
    %584 = vmatpush1.bf16.msra.mxu0 0
    %585 = vmatprep.subr.bf16.mxu0 0
    %586 = vmatpush1.bf16.msra.mxu0 0
    %587 = vmatprep.subr.bf16.mxu0 0
    %588 = vmatpush1.bf16.msra.mxu0 %v344
    %589 = vmatprep.subr.bf16.mxu0 0
    %590 = vmatpush1.bf16.msra.mxu0 %v343
    %591 = vmatprep.subr.bf16.mxu0 0
    %592 = vmatpush1.bf16.msra.mxu0 %v342
    %593 = vmatprep.subr.bf16.mxu0 0
    %594 = vmatpush1.bf16.msra.mxu0 %v341
    %595 = vmatprep.subr.bf16.mxu0 0
    %596 = vmatpush2.bf16.msra.mxu0 0
    %597 = vmatprep.subr.bf16.mxu0 0
    %598 = vmatpush2.bf16.msra.mxu0 0
    %599 = vmatprep.subr.bf16.mxu0 0
    %600 = vmatpush2.bf16.msra.mxu0 0
    %601 = vmatprep.subr.bf16.mxu0 0
    %602 = vmatpush2.bf16.msra.mxu0 0
    %603 = vmatprep.subr.bf16.mxu0 0
    %604 = vmatpush2.bf16.msra.mxu0 0
    %605 = vmatprep.subr.bf16.mxu0 0
    %606 = vmatpush2.bf16.msra.mxu0 0
    %607 = vmatprep.subr.bf16.mxu0 0
    %608 = vmatpush2.bf16.msra.mxu0 0
    %609 = vmatprep.subr.bf16.mxu0 0
    %610 = vmatpush2.bf16.msra.mxu0 0
    %611 = vmatprep.mubr.bf16.mxu0 0
    %612 = vmatmul.mubr.bf16.gmra.mxu0 %v533
    %v613 = vpop.f32.mrf.mxu0
    %v614 = vadd.f32 0.0, %v613
    %v615 = vpop.f32.mrf.mxu0
    %v616 = vpop.f32.mrf.mxu0
    %v617 = vadd.f32 0.0, %v616
    %v618 = vpop.f32.mrf.mxu0
    %619 = vdwg.mxu0
    %v620 = vpack.c.bf16 %v617, %v614
    %v621 = vld [vmem:[%s8] sm:$0xf]
    %v622 = vld [vmem:[%s8 + $0x4] sm:$0xf]
    %v623 = vld [vmem:[%s8 + $0x8] sm:$0xf]
    %v624 = vld [vmem:[%s8 + $0xc] sm:$0xf]
    %v625 = vld [vmem:[%s9] sm:$0x1]
    %v627 = vlaneseq
    %v628 = vshrl.u32 %v627, 7
    %v629 = vsub.s32 0, %v628
    %v630 = vrot.slane %v625, %v629
    %v636 = vunpack.c.l.b16 %v621
    %v637 = vunpack.c.l.b16 %v622
    %v638 = vunpack.c.l.b16 %v623
    %v639 = vunpack.c.l.b16 %v624
    %v640 = vpack.c.b16 %v637, %v636
    %v641 = vpack.c.b16 %v639, %v638
    %v645 = vsel %vm89, %v620, 0
    %647 = vmatprep.subr.bf16.mxu0 0
    %648 = vmatpush1.bf16.msra.mxu0 0
    %649 = vmatprep.subr.bf16.mxu0 0
    %650 = vmatpush1.bf16.msra.mxu0 0
    %651 = vmatprep.subr.bf16.mxu0 0
    %652 = vmatpush1.bf16.msra.mxu0 0
    %653 = vmatprep.subr.bf16.mxu0 0
    %654 = vmatpush1.bf16.msra.mxu0 0
    %655 = vmatprep.subr.bf16.mxu0 0
    %656 = vmatpush1.bf16.msra.mxu0 0
    %657 = vmatprep.subr.bf16.mxu0 0
    %658 = vmatpush1.bf16.msra.mxu0 0
    %659 = vmatprep.subr.bf16.mxu0 0
    %660 = vmatpush1.bf16.msra.mxu0 %v641
    %661 = vmatprep.subr.bf16.mxu0 0
    %662 = vmatpush1.bf16.msra.mxu0 %v640
    %663 = vmatprep.subr.bf16.mxu0 0
    %664 = vmatpush2.bf16.msra.mxu0 0
    %665 = vmatprep.subr.bf16.mxu0 0
    %666 = vmatpush2.bf16.msra.mxu0 0
    %667 = vmatprep.subr.bf16.mxu0 0
    %668 = vmatpush2.bf16.msra.mxu0 0
    %669 = vmatprep.subr.bf16.mxu0 0
    %670 = vmatpush2.bf16.msra.mxu0 0
    %671 = vmatprep.subr.bf16.mxu0 0
    %672 = vmatpush2.bf16.msra.mxu0 0
    %673 = vmatprep.subr.bf16.mxu0 0
    %674 = vmatpush2.bf16.msra.mxu0 0
    %675 = vmatprep.subr.bf16.mxu0 0
    %676 = vmatpush2.bf16.msra.mxu0 0
    %677 = vmatprep.subr.bf16.mxu0 0
    %678 = vmatpush2.bf16.msra.mxu0 0
    %679 = vmatprep.mubr.bf16.mxu0 0
    %680 = vmatmul.mubr.bf16.gmra.mxu0 %v645
    %v681 = vpop.f32.mrf.mxu0
    %v682 = vadd.f32 %v630, %v681
    %v683 = vpop.f32.mrf.mxu0
    %v684 = vpop.f32.mrf.mxu0
    %v685 = vadd.f32 %v630, %v684
    %v686 = vpop.f32.mrf.mxu0
    %687 = vdwg.mxu0
    %v688 = vadd.f32 %v63, %v682
    %v689 = vadd.f32 %v64, %v685
    %v690 = vld [vmem:[%s10] sm:$0x1]
    %v691 = vld [vmem:[%s11] sm:$0x1]
    %v692 = vsel %vm89, %v688, 0.0
    %693 = vadd.xlane.f32.xlu0 %v692
    %v694 = vpop.xlane.xlu0 %693
    %v695 = vsel %vm89, %v689, 0.0
    %696 = vadd.xlane.f32.xlu0 %v695
    %v697 = vpop.xlane.xlu0 %696
    %v698 = vrcp.pop 32.0
    %v699 = vmul.f32 %v694, %v698
    %v700 = vmul.f32 %v697, %v698
    %v701 = vsub.f32 %v688, %v699
    %v702 = vsub.f32 %v689, %v700
    %v703 = vmul.f32 %v701, %v701
    %v704 = vmul.f32 %v702, %v702
    %v705 = vsel %vm89, %v703, 0.0
    %706 = vadd.xlane.f32.xlu0 %v705
    %v707 = vpop.xlane.xlu0 %706
    %v708 = vsel %vm89, %v704, 0.0
    %709 = vadd.xlane.f32.xlu0 %v708
    %v710 = vpop.xlane.xlu0 %709
    %v711 = vmul.f32 %v707, %v698
    %v712 = vmul.f32 %v710, %v698
    %v713 = vadd.f32 %v711, 1e-06
    %v714 = vadd.f32 %v712, 1e-06
    %v715 = vrsqrt.pop %v713
    %v716 = vrsqrt.pop %v714
    %v717 = vmul.f32 %v701, %v715
    %v718 = vmul.f32 %v702, %v716
    %v720 = vlaneseq
    %v721 = vshrl.u32 %v720, 7
    %v722 = vsub.s32 0, %v721
    %v723 = vrot.slane %v690, %v722
    %v725 = vmul.f32 %v717, %v723
    %v726 = vmul.f32 %v718, %v723
    %v728 = vlaneseq
    %v729 = vshrl.u32 %v728, 7
    %v730 = vsub.s32 0, %v729
    %v731 = vrot.slane %v691, %v730
    %v733 = vadd.f32 %v725, %v731
    %v734 = vadd.f32 %v726, %v731
    %v735 = vpack.c.bf16 %v734, %v733
    %v736 = vld [vmem:[%s12] sm:$0xf]
    %v737 = vld [vmem:[%s12 + $0x4] sm:$0xf]
    %v738 = vld [vmem:[%s12 + $0x8] sm:$0xf]
    %v739 = vld [vmem:[%s12 + $0xc] sm:$0xf]
    %v740 = vld [vmem:[%s13] sm:$0x1]
    %v742 = vlaneseq
    %v743 = vshrl.u32 %v742, 7
    %v744 = vsub.s32 0, %v743
    %v745 = vrot.slane %v740, %v744
    %v751 = vunpack.c.l.b16 %v736
    %v752 = vunpack.c.l.b16 %v737
    %v753 = vunpack.c.l.b16 %v738
    %v754 = vunpack.c.l.b16 %v739
    %v755 = vpack.c.b16 %v752, %v751
    %v756 = vpack.c.b16 %v754, %v753
    %v760 = vsel %vm89, %v735, 0
    %762 = vmatprep.subr.bf16.mxu0 0
    %763 = vmatpush1.bf16.msra.mxu0 0
    %764 = vmatprep.subr.bf16.mxu0 0
    %765 = vmatpush1.bf16.msra.mxu0 0
    %766 = vmatprep.subr.bf16.mxu0 0
    %767 = vmatpush1.bf16.msra.mxu0 0
    %768 = vmatprep.subr.bf16.mxu0 0
    %769 = vmatpush1.bf16.msra.mxu0 0
    %770 = vmatprep.subr.bf16.mxu0 0
    %771 = vmatpush1.bf16.msra.mxu0 0
    %772 = vmatprep.subr.bf16.mxu0 0
    %773 = vmatpush1.bf16.msra.mxu0 0
    %774 = vmatprep.subr.bf16.mxu0 0
    %775 = vmatpush1.bf16.msra.mxu0 %v756
    %776 = vmatprep.subr.bf16.mxu0 0
    %777 = vmatpush1.bf16.msra.mxu0 %v755
    %778 = vmatprep.subr.bf16.mxu0 0
    %779 = vmatpush2.bf16.msra.mxu0 0
    %780 = vmatprep.subr.bf16.mxu0 0
    %781 = vmatpush2.bf16.msra.mxu0 0
    %782 = vmatprep.subr.bf16.mxu0 0
    %783 = vmatpush2.bf16.msra.mxu0 0
    %784 = vmatprep.subr.bf16.mxu0 0
    %785 = vmatpush2.bf16.msra.mxu0 0
    %786 = vmatprep.subr.bf16.mxu0 0
    %787 = vmatpush2.bf16.msra.mxu0 0
    %788 = vmatprep.subr.bf16.mxu0 0
    %789 = vmatpush2.bf16.msra.mxu0 0
    %790 = vmatprep.subr.bf16.mxu0 0
    %791 = vmatpush2.bf16.msra.mxu0 0
    %792 = vmatprep.subr.bf16.mxu0 0
    %793 = vmatpush2.bf16.msra.mxu0 0
    %794 = vmatprep.mubr.bf16.mxu0 0
    %795 = vmatmul.mubr.bf16.gmra.mxu0 %v760
    %v796 = vpop.f32.mrf.mxu0
    %v797 = vadd.f32 %v745, %v796
    %v798 = vpop.f32.mrf.mxu0
    %v799 = vpop.f32.mrf.mxu0
    %v800 = vadd.f32 %v745, %v799
    %v801 = vpop.f32.mrf.mxu0
    %802 = vdwg.mxu0
    %v803 = vmax.f32 %v797, 0.0
    %v804 = vmax.f32 %v800, 0.0
    %v805 = vpack.c.bf16 %v804, %v803
    %v806 = vld [vmem:[%s14] sm:$0xf]
    %v807 = vld [vmem:[%s14 + $0x4] sm:$0xf]
    %v808 = vld [vmem:[%s14 + $0x8] sm:$0xf]
    %v809 = vld [vmem:[%s14 + $0xc] sm:$0xf]
    %v810 = vld [vmem:[%s14 + $0x10] sm:$0xf]
    %v811 = vld [vmem:[%s14 + $0x14] sm:$0xf]
    %v812 = vld [vmem:[%s14 + $0x18] sm:$0xf]
    %v813 = vld [vmem:[%s14 + $0x1c] sm:$0xf]
    %v814 = vld [vmem:[%s14 + $0x20] sm:$0xf]
    %v815 = vld [vmem:[%s14 + $0x24] sm:$0xf]
    %v816 = vld [vmem:[%s14 + $0x28] sm:$0xf]
    %v817 = vld [vmem:[%s14 + $0x2c] sm:$0xf]
    %v818 = vld [vmem:[%s14 + $0x30] sm:$0xf]
    %v819 = vld [vmem:[%s14 + $0x34] sm:$0xf]
    %v820 = vld [vmem:[%s14 + $0x38] sm:$0xf]
    %v821 = vld [vmem:[%s14 + $0x3c] sm:$0xf]
    %v822 = vld [vmem:[%s15] sm:$0x1]
    %v824 = vlaneseq
    %v825 = vshrl.u32 %v824, 7
    %v826 = vsub.s32 0, %v825
    %v827 = vrot.slane %v822, %v826
    %v845 = vunpack.c.l.b16 %v806
    %v846 = vunpack.c.l.b16 %v807
    %v847 = vunpack.c.l.b16 %v808
    %v848 = vunpack.c.l.b16 %v809
    %v849 = vunpack.c.l.b16 %v810
    %v850 = vunpack.c.l.b16 %v811
    %v851 = vunpack.c.l.b16 %v812
    %v852 = vunpack.c.l.b16 %v813
    %v853 = vunpack.c.l.b16 %v814
    %v854 = vunpack.c.l.b16 %v815
    %v855 = vunpack.c.l.b16 %v816
    %v856 = vunpack.c.l.b16 %v817
    %v857 = vunpack.c.l.b16 %v818
    %v858 = vunpack.c.l.b16 %v819
    %v859 = vunpack.c.l.b16 %v820
    %v860 = vunpack.c.l.b16 %v821
    %v861 = vpack.c.b16 %v846, %v845
    %v862 = vpack.c.b16 %v848, %v847
    %v863 = vpack.c.b16 %v850, %v849
    %v864 = vpack.c.b16 %v852, %v851
    %v865 = vpack.c.b16 %v854, %v853
    %v866 = vpack.c.b16 %v856, %v855
    %v867 = vpack.c.b16 %v858, %v857
    %v868 = vpack.c.b16 %v860, %v859
    %877 = vmatprep.subr.bf16.mxu0 0
    %878 = vmatpush1.bf16.msra.mxu0 %v868
    %879 = vmatprep.subr.bf16.mxu0 0
    %880 = vmatpush1.bf16.msra.mxu0 %v867
    %881 = vmatprep.subr.bf16.mxu0 0
    %882 = vmatpush1.bf16.msra.mxu0 %v866
    %883 = vmatprep.subr.bf16.mxu0 0
    %884 = vmatpush1.bf16.msra.mxu0 %v865
    %885 = vmatprep.subr.bf16.mxu0 0
    %886 = vmatpush1.bf16.msra.mxu0 %v864
    %887 = vmatprep.subr.bf16.mxu0 0
    %888 = vmatpush1.bf16.msra.mxu0 %v863
    %889 = vmatprep.subr.bf16.mxu0 0
    %890 = vmatpush1.bf16.msra.mxu0 %v862
    %891 = vmatprep.subr.bf16.mxu0 0
    %892 = vmatpush1.bf16.msra.mxu0 %v861
    %893 = vmatprep.subr.bf16.mxu0 0
    %894 = vmatpush2.bf16.msra.mxu0 0
    %895 = vmatprep.subr.bf16.mxu0 0
    %896 = vmatpush2.bf16.msra.mxu0 0
    %897 = vmatprep.subr.bf16.mxu0 0
    %898 = vmatpush2.bf16.msra.mxu0 0
    %899 = vmatprep.subr.bf16.mxu0 0
    %900 = vmatpush2.bf16.msra.mxu0 0
    %901 = vmatprep.subr.bf16.mxu0 0
    %902 = vmatpush2.bf16.msra.mxu0 0
    %903 = vmatprep.subr.bf16.mxu0 0
    %904 = vmatpush2.bf16.msra.mxu0 0
    %905 = vmatprep.subr.bf16.mxu0 0
    %906 = vmatpush2.bf16.msra.mxu0 0
    %907 = vmatprep.subr.bf16.mxu0 0
    %908 = vmatpush2.bf16.msra.mxu0 0
    %909 = vmatprep.mubr.bf16.mxu0 0
    %910 = vmatmul.mubr.bf16.gmra.mxu0 %v805
    %v911 = vpop.f32.mrf.mxu0
    %v912 = vadd.f32 %v827, %v911
    %v913 = vpop.f32.mrf.mxu0
    %v914 = vpop.f32.mrf.mxu0
    %v915 = vadd.f32 %v827, %v914
    %v916 = vpop.f32.mrf.mxu0
    %917 = vdwg.mxu0
    %v918 = vadd.f32 %v733, %v912
    %v919 = vadd.f32 %v734, %v915
    %v920 = vld [vmem:[%s16] sm:$0x1]
    %v921 = vld [vmem:[%s17] sm:$0x1]
    %v922 = vsel %vm89, %v918, 0.0
    %923 = vadd.xlane.f32.xlu0 %v922
    %v924 = vpop.xlane.xlu0 %923
    %v925 = vsel %vm89, %v919, 0.0
    %926 = vadd.xlane.f32.xlu0 %v925
    %v927 = vpop.xlane.xlu0 %926
    %v928 = vmul.f32 %v924, %v698
    %v929 = vmul.f32 %v927, %v698
    %v930 = vsub.f32 %v918, %v928
    %v931 = vsub.f32 %v919, %v929
    %v932 = vmul.f32 %v930, %v930
    %v933 = vmul.f32 %v931, %v931
    %v934 = vsel %vm89, %v932, 0.0
    %935 = vadd.xlane.f32.xlu0 %v934
    %v936 = vpop.xlane.xlu0 %935
    %v937 = vsel %vm89, %v933, 0.0
    %938 = vadd.xlane.f32.xlu0 %v937
    %v939 = vpop.xlane.xlu0 %938
    %v940 = vmul.f32 %v936, %v698
    %v941 = vmul.f32 %v939, %v698
    %v942 = vadd.f32 %v940, 1e-06
    %v943 = vadd.f32 %v941, 1e-06
    %v944 = vrsqrt.pop %v942
    %v945 = vrsqrt.pop %v943
    %v946 = vmul.f32 %v930, %v944
    %v947 = vmul.f32 %v931, %v945
    %v949 = vlaneseq
    %v950 = vshrl.u32 %v949, 7
    %v951 = vsub.s32 0, %v950
    %v952 = vrot.slane %v920, %v951
    %v954 = vmul.f32 %v946, %v952
    %v955 = vmul.f32 %v947, %v952
    %v957 = vlaneseq
    %v958 = vshrl.u32 %v957, 7
    %v959 = vsub.s32 0, %v958
    %v960 = vrot.slane %v921, %v959
    %v962 = vadd.f32 %v954, %v960
    %v963 = vadd.f32 %v955, %v960
    %964 = vst.msk [vmem:[#allocation2] sm:$0xff] %vm89, %v962
    %965 = vst.msk [vmem:[#allocation2 + $0x8] sm:$0xff] %vm89, %v963
    // Predicated region
    $region74: #{tpu_custom_call.1} parent=1 // pred_check
      _
    $region75: #{tpu_custom_call.1} parent=1 // pred_check_branch
      %967 = sbr.rel (0) target = $region77
    $region76: #{tpu_custom_call.1} parent=1 // pred_region
      %s969 = ssub.s32 256, 256
      %970 = vsyncadd [#allocation3], %s969
      %s971 = sshll.u32 [#allocation2], 4
      %s972 = int_to_ptr.vmem [resolvable:$true] %s971
      %977 = dma.vmem_to_hbm [thread:$0]  %s972, 256, %s18, [#allocation3], 128, 128, 8
    $region77: #{tpu_custom_call.1} parent=1 // pred_fallthru
      _
    // Predicated region
    $region78: #{tpu_custom_call.1} parent=1 // pred_check
      _
    $region79: #{tpu_custom_call.1} parent=1 // pred_check_branch
      %979 = sbr.rel (0) target = $region81
    $region80: #{tpu_custom_call.1} parent=1 // pred_region
      _
    $region81: #{tpu_custom_call.1} parent=1 // pred_fallthru
      _
    // Predicated region
    $region82: #{tpu_custom_call.1} parent=1 // pred_check
      _
    $region83: #{tpu_custom_call.1} parent=1 // pred_check_branch
      %981 = sbr.rel (0) target = $region85
    $region84: #{tpu_custom_call.1} parent=1 // pred_region
      %982 = dma.done [#allocation3], 256
    $region85: #{tpu_custom_call.1} parent=1 // pred_fallthru
      _
    // Predicated region
    $region86: #{tpu_custom_call.1} parent=1 // pred_check
      _
    $region87: #{tpu_custom_call.1} parent=1 // pred_check_branch
      %984 = sbr.rel (0) target = $region89
    $region88: #{tpu_custom_call.1} parent=1 // pred_region
      _
    $region89: #{tpu_custom_call.1} parent=1 // pred_fallthru
      _
    %985 = vsyncpa [#allocation3], 1

</llo_original>
